<compile_context>
chip_gen: v5e
topology: v5e:2x2
jax: 0.10.0
libtpu: 0.0.40
codegen_flags: <defaults>
</compile_context>

<pallas_src>
import functools

import jax
import jax.numpy as jnp
from jax.experimental import pallas as pl
from jax.experimental.pallas import tpu as pltpu  # noqa: F401  (see TODOs below)


def rnn_fc_kernel(x_ref, wih_row_ref, whh_t_ref, b_ref, wfc_ref, bfc_ref,
                  out_ref, *, T, B, H):
    """Single invocation; whole (small) sequence resident in VMEM.

    x_ref       : (T*B, 1)  time-major input, batch padded to a sublane multiple
    wih_row_ref : (1, H)    W_ih^T  (input_size == 1 -> a single row)
    whh_t_ref   : (H, H)    W_hh^T
    b_ref       : (1, H)    b_ih + b_hh
    wfc_ref     : (1, H)    W_fc as a row
    bfc_ref     : (1, 1)    b_fc
    out_ref     : (T*B, 1)  y for every (t, b)
    """
    # Hoist all weight reads out of the unrolled loop (read once into vregs).
    wih_row = wih_row_ref[...]            # (1, H)
    whh_t = whh_t_ref[...]                # (H, H)
    b = b_ref[...]                        # (1, H)
    wfc = wfc_ref[...]                    # (1, H)
    bfc = bfc_ref[...]                    # (1, 1)

    # Fully-unrolled recurrence (T is small & static).  Per step only
    # h @ W_hh^T (MXU) + add + tanh (EUP) sit on the serial critical path; the
    # I==1 input projection (VPU broadcast FMA) and the folded FC head
    # (VPU multiply + lane reduce) land in otherwise-idle slots.
    # Everything stays f32 so the 1e-5 check against the scan reference holds.
    # TODO(synk): if the bundle dump shows W_hh^T being re-pushed into the MXU
    # every unrolled step, keep it resident with pltpu.matmul_push_rhs once
    # before the loop + pltpu.matmul_acc_lhs / matmul_pop per step.
    # TODO(synk): for T beyond a few dozen, switch to lax.fori_loop(unroll=4..8)
    # and emit a lane-dense output slab instead of per-step (B, 1) stores.
    h = jnp.zeros((B, H), jnp.float32)
    for t in range(T):
        x_t = x_ref[t * B:(t + 1) * B, :]                        # (B, 1)
        pre = x_t * wih_row + b + jnp.dot(
            h, whh_t, preferred_element_type=jnp.float32)        # (B, H)
        h = jnp.tanh(pre)
        # FC head folded into the loop: no (T*B, H) hidden-state scratch.
        y = jnp.sum(h * wfc, axis=-1, keepdims=True) + bfc       # (B, 1)
        out_ref[t * B:(t + 1) * B, :] = y.astype(out_ref.dtype)  # aligned static store


def sine_rnn_forward(x, params):
    """x: (B, T, I) float32, batch_first (like PyTorch). Returns (B, T, 1)."""
    B, T, I = x.shape
    assert I == 1, "SineRNN spec has input_size == 1"
    H = params["w_hh"].shape[0]
    Bp = ((B + 7) // 8) * 8            # pad batch to an 8-sublane multiple (f32)

    # Glue (cheap at these sizes, fused by XLA): time-major + batch pad + flatten
    # so every per-step slice inside the kernel is a contiguous, aligned (Bp, .).
    x_tm = jnp.transpose(x, (1, 0, 2))                          # (T, B, 1)
    x_tm = jnp.pad(x_tm, ((0, 0), (0, Bp - B), (0, 0)))         # (T, Bp, 1)
    x_flat = x_tm.reshape(T * Bp, 1)                            # (T*Bp, 1)

    wih_row = params["w_ih"].T                                  # (1, H)  (I == 1)
    whh_t = params["w_hh"].T                                    # (H, H)
    b = (params["b_ih"] + params["b_hh"]).reshape(1, H)         # (1, H)
    wfc = params["w_fc"].reshape(1, H)                          # (1, H)
    bfc = params["b_fc"].reshape(1, 1)                          # (1, 1)

    # Single invocation, no grid: inputs + weights + the O(Bp*H) hidden state fit
    # in VMEM trivially (a few KiB).  With the FC folded into the loop the
    # resident footprint no longer scales with T (only x/out residency does), so
    # even v7x's 64 MiB VMEM is not a concern until T*Bp is in the millions.
    # TODO(synk): for large batch add a leading grid axis over 8-row batch chunks
    # with compiler_params=pltpu.CompilerParams(dimension_semantics=("parallel",))
    # (~2x on v7x's two TensorCores) and/or pack 4 batch groups along lanes with
    # a 128x128 block-diagonal W_hh^T.
    out_flat = pl.pallas_call(
        functools.partial(rnn_fc_kernel, T=T, B=Bp, H=H),
        out_shape=jax.ShapeDtypeStruct((T * Bp, 1), x.dtype),
    )(x_flat, wih_row, whh_t, b, wfc, bfc)

    out = out_flat.reshape(T, Bp)[:, :B]                        # (T, B), drop padding
    return jnp.transpose(out)[..., None]                        # (B, T, 1)


def sine_rnn_reference(x, params):
    """Pure-JAX reference matching torch.nn.RNN(tanh) + Linear semantics."""
    B, T, I = x.shape
    H = params["w_hh"].shape[0]
    b = params["b_ih"] + params["b_hh"]

    def step(h, x_t):
        h_new = jnp.tanh(x_t @ params["w_ih"].T + h @ params["w_hh"].T + b)
        return h_new, h_new

    h0 = jnp.zeros((B, H), jnp.float32)
    _, hs = jax.lax.scan(step, h0, jnp.transpose(x, (1, 0, 2)))  # (T, B, H)
    out = jnp.transpose(hs, (1, 0, 2))                           # (B, T, H)
    return out @ params["w_fc"].T + params["b_fc"]               # (B, T, 1)


def init_params(key, input_size=1, hidden_size=32):
    # Deterministic synthetic init (PyTorch-style uniform(-1/sqrt(H), 1/sqrt(H))).
    k1, k2, k3, k4, k5, k6 = jax.random.split(key, 6)
    s = 1.0 / jnp.sqrt(hidden_size)
    u = lambda k, shape: jax.random.uniform(k, shape, jnp.float32, -s, s)
    return {
        "w_ih": u(k1, (hidden_size, input_size)),
        "w_hh": u(k2, (hidden_size, hidden_size)),
        "b_ih": u(k3, (hidden_size,)),
        "b_hh": u(k4, (hidden_size,)),
        "w_fc": u(k5, (1, hidden_size)),
        "b_fc": u(k6, (1,)),
    }


if __name__ == "__main__":
    key = jax.random.PRNGKey(0)
    k_param, k_x = jax.random.split(key)

    B, T, I, H = 2, 8, 1, 32
    params = init_params(k_param, input_size=I, hidden_size=H)
    x = jax.random.normal(k_x, (B, T, I), jnp.float32)

    out = sine_rnn_forward(x, params)
    out = jax.block_until_ready(out)

    ref = jax.block_until_ready(sine_rnn_reference(x, params))
    assert out.shape == (B, T, 1), out.shape
    assert jnp.allclose(out, ref, atol=1e-5, rtol=1e-5), (
        f"max abs err {jnp.max(jnp.abs(out - ref))}")

    print("KERNEL_OK")
</pallas_src>

<mosaic_0001>
module attributes {stable_mosaic.version = 11 : i64} {
  func.func @rnn_fc_kernel(%arg0: memref<64x1xf32, #tpu.memory_space<vmem>>, %arg1: memref<1x32xf32, #tpu.memory_space<vmem>>, %arg2: memref<32x32xf32, #tpu.memory_space<vmem>>, %arg3: memref<1x32xf32, #tpu.memory_space<vmem>>, %arg4: memref<1x32xf32, #tpu.memory_space<vmem>>, %arg5: memref<1x1xf32, #tpu.memory_space<vmem>>, %arg6: memref<64x1xf32, #tpu.memory_space<vmem>>) attributes {dimension_semantics = [], scalar_prefetch = 0 : i64, scratch_operands = 0 : i64, tpu.core_type = #tpu.core_type<tc>} {
    %c0 = arith.constant 0 : index
    %c0_0 = arith.constant 0 : index
    %0 = vector.load %arg1[%c0, %c0_0] : memref<1x32xf32, #tpu.memory_space<vmem>>, vector<1x32xf32>
    %c0_1 = arith.constant 0 : index
    %c0_2 = arith.constant 0 : index
    %1 = vector.load %arg2[%c0_1, %c0_2] : memref<32x32xf32, #tpu.memory_space<vmem>>, vector<32x32xf32>
    %c0_3 = arith.constant 0 : index
    %c0_4 = arith.constant 0 : index
    %2 = vector.load %arg3[%c0_3, %c0_4] : memref<1x32xf32, #tpu.memory_space<vmem>>, vector<1x32xf32>
    %c0_5 = arith.constant 0 : index
    %c0_6 = arith.constant 0 : index
    %3 = vector.load %arg4[%c0_5, %c0_6] : memref<1x32xf32, #tpu.memory_space<vmem>>, vector<1x32xf32>
    %c0_7 = arith.constant 0 : index
    %c0_8 = arith.constant 0 : index
    %4 = vector.load %arg5[%c0_7, %c0_8] : memref<1x1xf32, #tpu.memory_space<vmem>>, vector<1x1xf32>
    %cst = arith.constant 0.000000e+00 : f32
    %5 = vector.broadcast %cst : f32 to vector<8x32xf32>
    %c0_9 = arith.constant 0 : index
    %c0_10 = arith.constant 0 : index
    %6 = vector.load %arg0[%c0_9, %c0_10] : memref<64x1xf32, #tpu.memory_space<vmem>>, vector<8x1xf32>
    %7 = vector.broadcast %6 : vector<8x1xf32> to vector<8x32xf32>
    %8 = vector.broadcast %0 : vector<1x32xf32> to vector<8x32xf32>
    %9 = arith.mulf %7, %8 : vector<8x32xf32>
    %10 = vector.broadcast %2 : vector<1x32xf32> to vector<8x32xf32>
    %11 = arith.addf %9, %10 : vector<8x32xf32>
    %cst_11 = arith.constant dense<0.000000e+00> : vector<8x32xf32>
    %12 = tpu.matmul %5, %1, %cst_11 {dimension_numbers = #tpu.dot_dimension_numbers<[1], [0], [0], [1], [0, 0, 1, 1], [], []>} : vector<8x32xf32>, vector<32x32xf32>, vector<8x32xf32> -> vector<8x32xf32>
    %13 = arith.addf %11, %12 : vector<8x32xf32>
    %14 = math.tanh %13 : vector<8x32xf32>
    %15 = vector.broadcast %3 : vector<1x32xf32> to vector<8x32xf32>
    %16 = arith.mulf %14, %15 : vector<8x32xf32>
    %cst_12 = arith.constant dense<0.000000e+00> : vector<8xf32>
    %17 = vector.multi_reduction <add>, %16, %cst_12 [1] : vector<8x32xf32> to vector<8xf32>
    %18 = vector.shape_cast %17 : vector<8xf32> to vector<8x1xf32>
    %19 = vector.broadcast %4 : vector<1x1xf32> to vector<8x1xf32>
    %20 = arith.addf %18, %19 : vector<8x1xf32>
    %c0_13 = arith.constant 0 : index
    %c0_14 = arith.constant 0 : index
    %21 = vector.load %arg6[%c0_13, %c0_14] : memref<64x1xf32, #tpu.memory_space<vmem>>, vector<8x1xf32>
    tpu.vector_store %arg6[%c0_13, %c0_14], %20 {strides = array<i32>} : memref<64x1xf32, #tpu.memory_space<vmem>>, vector<8x1xf32>,
    %c8 = arith.constant 8 : index
    %c0_15 = arith.constant 0 : index
    %22 = vector.load %arg0[%c8, %c0_15] : memref<64x1xf32, #tpu.memory_space<vmem>>, vector<8x1xf32>
    %23 = vector.broadcast %22 : vector<8x1xf32> to vector<8x32xf32>
    %24 = vector.broadcast %0 : vector<1x32xf32> to vector<8x32xf32>
    %25 = arith.mulf %23, %24 : vector<8x32xf32>
    %26 = vector.broadcast %2 : vector<1x32xf32> to vector<8x32xf32>
    %27 = arith.addf %25, %26 : vector<8x32xf32>
    %cst_16 = arith.constant dense<0.000000e+00> : vector<8x32xf32>
    %28 = tpu.matmul %14, %1, %cst_16 {dimension_numbers = #tpu.dot_dimension_numbers<[1], [0], [0], [1], [0, 0, 1, 1], [], []>} : vector<8x32xf32>, vector<32x32xf32>, vector<8x32xf32> -> vector<8x32xf32>
    %29 = arith.addf %27, %28 : vector<8x32xf32>
    %30 = math.tanh %29 : vector<8x32xf32>
    %31 = vector.broadcast %3 : vector<1x32xf32> to vector<8x32xf32>
    %32 = arith.mulf %30, %31 : vector<8x32xf32>
    %cst_17 = arith.constant dense<0.000000e+00> : vector<8xf32>
    %33 = vector.multi_reduction <add>, %32, %cst_17 [1] : vector<8x32xf32> to vector<8xf32>
    %34 = vector.shape_cast %33 : vector<8xf32> to vector<8x1xf32>
    %35 = vector.broadcast %4 : vector<1x1xf32> to vector<8x1xf32>
    %36 = arith.addf %34, %35 : vector<8x1xf32>
    %c8_18 = arith.constant 8 : index
    %c0_19 = arith.constant 0 : index
    %37 = vector.load %arg6[%c8_18, %c0_19] : memref<64x1xf32, #tpu.memory_space<vmem>>, vector<8x1xf32>
    tpu.vector_store %arg6[%c8_18, %c0_19], %36 {strides = array<i32>} : memref<64x1xf32, #tpu.memory_space<vmem>>, vector<8x1xf32>,
    %c16 = arith.constant 16 : index
    %c0_20 = arith.constant 0 : index
    %38 = vector.load %arg0[%c16, %c0_20] : memref<64x1xf32, #tpu.memory_space<vmem>>, vector<8x1xf32>
    %39 = vector.broadcast %38 : vector<8x1xf32> to vector<8x32xf32>
    %40 = vector.broadcast %0 : vector<1x32xf32> to vector<8x32xf32>
    %41 = arith.mulf %39, %40 : vector<8x32xf32>
    %42 = vector.broadcast %2 : vector<1x32xf32> to vector<8x32xf32>
    %43 = arith.addf %41, %42 : vector<8x32xf32>
    %cst_21 = arith.constant dense<0.000000e+00> : vector<8x32xf32>
    %44 = tpu.matmul %30, %1, %cst_21 {dimension_numbers = #tpu.dot_dimension_numbers<[1], [0], [0], [1], [0, 0, 1, 1], [], []>} : vector<8x32xf32>, vector<32x32xf32>, vector<8x32xf32> -> vector<8x32xf32>
    %45 = arith.addf %43, %44 : vector<8x32xf32>
    %46 = math.tanh %45 : vector<8x32xf32>
    %47 = vector.broadcast %3 : vector<1x32xf32> to vector<8x32xf32>
    %48 = arith.mulf %46, %47 : vector<8x32xf32>
    %cst_22 = arith.constant dense<0.000000e+00> : vector<8xf32>
    %49 = vector.multi_reduction <add>, %48, %cst_22 [1] : vector<8x32xf32> to vector<8xf32>
    %50 = vector.shape_cast %49 : vector<8xf32> to vector<8x1xf32>
    %51 = vector.broadcast %4 : vector<1x1xf32> to vector<8x1xf32>
    %52 = arith.addf %50, %51 : vector<8x1xf32>
    %c16_23 = arith.constant 16 : index
    %c0_24 = arith.constant 0 : index
    %53 = vector.load %arg6[%c16_23, %c0_24] : memref<64x1xf32, #tpu.memory_space<vmem>>, vector<8x1xf32>
    tpu.vector_store %arg6[%c16_23, %c0_24], %52 {strides = array<i32>} : memref<64x1xf32, #tpu.memory_space<vmem>>, vector<8x1xf32>,
    %c24 = arith.constant 24 : index
    %c0_25 = arith.constant 0 : index
    %54 = vector.load %arg0[%c24, %c0_25] : memref<64x1xf32, #tpu.memory_space<vmem>>, vector<8x1xf32>
    %55 = vector.broadcast %54 : vector<8x1xf32> to vector<8x32xf32>
    %56 = vector.broadcast %0 : vector<1x32xf32> to vector<8x32xf32>
    %57 = arith.mulf %55, %56 : vector<8x32xf32>
    %58 = vector.broadcast %2 : vector<1x32xf32> to vector<8x32xf32>
    %59 = arith.addf %57, %58 : vector<8x32xf32>
    %cst_26 = arith.constant dense<0.000000e+00> : vector<8x32xf32>
    %60 = tpu.matmul %46, %1, %cst_26 {dimension_numbers = #tpu.dot_dimension_numbers<[1], [0], [0], [1], [0, 0, 1, 1], [], []>} : vector<8x32xf32>, vector<32x32xf32>, vector<8x32xf32> -> vector<8x32xf32>
    %61 = arith.addf %59, %60 : vector<8x32xf32>
    %62 = math.tanh %61 : vector<8x32xf32>
    %63 = vector.broadcast %3 : vector<1x32xf32> to vector<8x32xf32>
    %64 = arith.mulf %62, %63 : vector<8x32xf32>
    %cst_27 = arith.constant dense<0.000000e+00> : vector<8xf32>
    %65 = vector.multi_reduction <add>, %64, %cst_27 [1] : vector<8x32xf32> to vector<8xf32>
    %66 = vector.shape_cast %65 : vector<8xf32> to vector<8x1xf32>
    %67 = vector.broadcast %4 : vector<1x1xf32> to vector<8x1xf32>
    %68 = arith.addf %66, %67 : vector<8x1xf32>
    %c24_28 = arith.constant 24 : index
    %c0_29 = arith.constant 0 : index
    %69 = vector.load %arg6[%c24_28, %c0_29] : memref<64x1xf32, #tpu.memory_space<vmem>>, vector<8x1xf32>
    tpu.vector_store %arg6[%c24_28, %c0_29], %68 {strides = array<i32>} : memref<64x1xf32, #tpu.memory_space<vmem>>, vector<8x1xf32>,
    %c32 = arith.constant 32 : index
    %c0_30 = arith.constant 0 : index
    %70 = vector.load %arg0[%c32, %c0_30] : memref<64x1xf32, #tpu.memory_space<vmem>>, vector<8x1xf32>
    %71 = vector.broadcast %70 : vector<8x1xf32> to vector<8x32xf32>
    %72 = vector.broadcast %0 : vector<1x32xf32> to vector<8x32xf32>
    %73 = arith.mulf %71, %72 : vector<8x32xf32>
    %74 = vector.broadcast %2 : vector<1x32xf32> to vector<8x32xf32>
    %75 = arith.addf %73, %74 : vector<8x32xf32>
    %cst_31 = arith.constant dense<0.000000e+00> : vector<8x32xf32>
    %76 = tpu.matmul %62, %1, %cst_31 {dimension_numbers = #tpu.dot_dimension_numbers<[1], [0], [0], [1], [0, 0, 1, 1], [], []>} : vector<8x32xf32>, vector<32x32xf32>, vector<8x32xf32> -> vector<8x32xf32>
    %77 = arith.addf %75, %76 : vector<8x32xf32>
    %78 = math.tanh %77 : vector<8x32xf32>
    %79 = vector.broadcast %3 : vector<1x32xf32> to vector<8x32xf32>
    %80 = arith.mulf %78, %79 : vector<8x32xf32>
    %cst_32 = arith.constant dense<0.000000e+00> : vector<8xf32>
    %81 = vector.multi_reduction <add>, %80, %cst_32 [1] : vector<8x32xf32> to vector<8xf32>
    %82 = vector.shape_cast %81 : vector<8xf32> to vector<8x1xf32>
    %83 = vector.broadcast %4 : vector<1x1xf32> to vector<8x1xf32>
    %84 = arith.addf %82, %83 : vector<8x1xf32>
    %c32_33 = arith.constant 32 : index
    %c0_34 = arith.constant 0 : index
    %85 = vector.load %arg6[%c32_33, %c0_34] : memref<64x1xf32, #tpu.memory_space<vmem>>, vector<8x1xf32>
    tpu.vector_store %arg6[%c32_33, %c0_34], %84 {strides = array<i32>} : memref<64x1xf32, #tpu.memory_space<vmem>>, vector<8x1xf32>,
    %c40 = arith.constant 40 : index
    %c0_35 = arith.constant 0 : index
    %86 = vector.load %arg0[%c40, %c0_35] : memref<64x1xf32, #tpu.memory_space<vmem>>, vector<8x1xf32>
    %87 = vector.broadcast %86 : vector<8x1xf32> to vector<8x32xf32>
    %88 = vector.broadcast %0 : vector<1x32xf32> to vector<8x32xf32>
    %89 = arith.mulf %87, %88 : vector<8x32xf32>
    %90 = vector.broadcast %2 : vector<1x32xf32> to vector<8x32xf32>
    %91 = arith.addf %89, %90 : vector<8x32xf32>
    %cst_36 = arith.constant dense<0.000000e+00> : vector<8x32xf32>
    %92 = tpu.matmul %78, %1, %cst_36 {dimension_numbers = #tpu.dot_dimension_numbers<[1], [0], [0], [1], [0, 0, 1, 1], [], []>} : vector<8x32xf32>, vector<32x32xf32>, vector<8x32xf32> -> vector<8x32xf32>
    %93 = arith.addf %91, %92 : vector<8x32xf32>
    %94 = math.tanh %93 : vector<8x32xf32>
    %95 = vector.broadcast %3 : vector<1x32xf32> to vector<8x32xf32>
    %96 = arith.mulf %94, %95 : vector<8x32xf32>
    %cst_37 = arith.constant dense<0.000000e+00> : vector<8xf32>
    %97 = vector.multi_reduction <add>, %96, %cst_37 [1] : vector<8x32xf32> to vector<8xf32>
    %98 = vector.shape_cast %97 : vector<8xf32> to vector<8x1xf32>
    %99 = vector.broadcast %4 : vector<1x1xf32> to vector<8x1xf32>
    %100 = arith.addf %98, %99 : vector<8x1xf32>
    %c40_38 = arith.constant 40 : index
    %c0_39 = arith.constant 0 : index
    %101 = vector.load %arg6[%c40_38, %c0_39] : memref<64x1xf32, #tpu.memory_space<vmem>>, vector<8x1xf32>
    tpu.vector_store %arg6[%c40_38, %c0_39], %100 {strides = array<i32>} : memref<64x1xf32, #tpu.memory_space<vmem>>, vector<8x1xf32>,
    %c48 = arith.constant 48 : index
    %c0_40 = arith.constant 0 : index
    %102 = vector.load %arg0[%c48, %c0_40] : memref<64x1xf32, #tpu.memory_space<vmem>>, vector<8x1xf32>
    %103 = vector.broadcast %102 : vector<8x1xf32> to vector<8x32xf32>
    %104 = vector.broadcast %0 : vector<1x32xf32> to vector<8x32xf32>
    %105 = arith.mulf %103, %104 : vector<8x32xf32>
    %106 = vector.broadcast %2 : vector<1x32xf32> to vector<8x32xf32>
    %107 = arith.addf %105, %106 : vector<8x32xf32>
    %cst_41 = arith.constant dense<0.000000e+00> : vector<8x32xf32>
    %108 = tpu.matmul %94, %1, %cst_41 {dimension_numbers = #tpu.dot_dimension_numbers<[1], [0], [0], [1], [0, 0, 1, 1], [], []>} : vector<8x32xf32>, vector<32x32xf32>, vector<8x32xf32> -> vector<8x32xf32>
    %109 = arith.addf %107, %108 : vector<8x32xf32>
    %110 = math.tanh %109 : vector<8x32xf32>
    %111 = vector.broadcast %3 : vector<1x32xf32> to vector<8x32xf32>
    %112 = arith.mulf %110, %111 : vector<8x32xf32>
    %cst_42 = arith.constant dense<0.000000e+00> : vector<8xf32>
    %113 = vector.multi_reduction <add>, %112, %cst_42 [1] : vector<8x32xf32> to vector<8xf32>
    %114 = vector.shape_cast %113 : vector<8xf32> to vector<8x1xf32>
    %115 = vector.broadcast %4 : vector<1x1xf32> to vector<8x1xf32>
    %116 = arith.addf %114, %115 : vector<8x1xf32>
    %c48_43 = arith.constant 48 : index
    %c0_44 = arith.constant 0 : index
    %117 = vector.load %arg6[%c48_43, %c0_44] : memref<64x1xf32, #tpu.memory_space<vmem>>, vector<8x1xf32>
    tpu.vector_store %arg6[%c48_43, %c0_44], %116 {strides = array<i32>} : memref<64x1xf32, #tpu.memory_space<vmem>>, vector<8x1xf32>,
    %c56 = arith.constant 56 : index
    %c0_45 = arith.constant 0 : index
    %118 = vector.load %arg0[%c56, %c0_45] : memref<64x1xf32, #tpu.memory_space<vmem>>, vector<8x1xf32>
    %119 = vector.broadcast %118 : vector<8x1xf32> to vector<8x32xf32>
    %120 = vector.broadcast %0 : vector<1x32xf32> to vector<8x32xf32>
    %121 = arith.mulf %119, %120 : vector<8x32xf32>
    %122 = vector.broadcast %2 : vector<1x32xf32> to vector<8x32xf32>
    %123 = arith.addf %121, %122 : vector<8x32xf32>
    %cst_46 = arith.constant dense<0.000000e+00> : vector<8x32xf32>
    %124 = tpu.matmul %110, %1, %cst_46 {dimension_numbers = #tpu.dot_dimension_numbers<[1], [0], [0], [1], [0, 0, 1, 1], [], []>} : vector<8x32xf32>, vector<32x32xf32>, vector<8x32xf32> -> vector<8x32xf32>
    %125 = arith.addf %123, %124 : vector<8x32xf32>
    %126 = math.tanh %125 : vector<8x32xf32>
    %127 = vector.broadcast %3 : vector<1x32xf32> to vector<8x32xf32>
    %128 = arith.mulf %126, %127 : vector<8x32xf32>
    %cst_47 = arith.constant dense<0.000000e+00> : vector<8xf32>
    %129 = vector.multi_reduction <add>, %128, %cst_47 [1] : vector<8x32xf32> to vector<8xf32>
    %130 = vector.shape_cast %129 : vector<8xf32> to vector<8x1xf32>
    %131 = vector.broadcast %4 : vector<1x1xf32> to vector<8x1xf32>
    %132 = arith.addf %130, %131 : vector<8x1xf32>
    %c56_48 = arith.constant 56 : index
    %c0_49 = arith.constant 0 : index
    %133 = vector.load %arg6[%c56_48, %c0_49] : memref<64x1xf32, #tpu.memory_space<vmem>>, vector<8x1xf32>
    tpu.vector_store %arg6[%c56_48, %c0_49], %132 {strides = array<i32>} : memref<64x1xf32, #tpu.memory_space<vmem>>, vector<8x1xf32>,
    return
  }
}

</mosaic_0001>

<llo_original>
// kernel: tpu_custom_call.1
$region0: #{tpu_custom_call.1}
  #allocation0 [shape = 'u32[]', space=smem, size = 0x4, offset = 0x4, fixed_abs, tag = 'smem constant byte address 0x4 - core index']
  #allocation1 [shape = 'u32[72,128]{1,0:T(1,128)}', space=vmem, size = 0x9000, scoped, tag = 'internal scratch']
  #allocation2 [shape = 'f32[1,1]{1,0:T(1,128)S(1)}', space=vmem, size = 0x200, scoped, tag = 'scoped memory for tpu_custom_call.1']
  %s0 = inlined_call_operand.vmem [shape: f32[64,1], index: 0, kind: input, shape index: {}]
  %s1 = inlined_call_operand.vmem [shape: f32[1,32], index: 1, kind: input, shape index: {}]
  %s2 = inlined_call_operand.vmem [shape: f32[32,32], index: 2, kind: input, shape index: {}]
  %s3 = inlined_call_operand.vmem [shape: f32[1,32], index: 3, kind: input, shape index: {}]
  %s4 = inlined_call_operand.vmem [shape: f32[1,32], index: 4, kind: input, shape index: {}]
  %s5 = inlined_call_operand.<no memory space> [shape: f32[1,1], index: 5, kind: input, shape index: {}]
  %s6 = inlined_call_operand.vmem [shape: f32[64,1], index: 6, kind: output, shape index: {}]
  %s7 = sld [smem:[#allocation0]]
  $region34: #{tpu_custom_call.1} parent=0
    _
  %s9 = ssub.s32 1, %s7
  %s10 = scalar_select 0, %s9, %s7
  %v11 = vstv %s5
  %12 = vst [vmem:[#allocation2] sm:$0x1] %v11
  // Predicated region
  $region2: #{tpu_custom_call.1} parent=0 // pred_check
    _
  $region3: #{tpu_custom_call.1} parent=0 // pred_check_branch
    %14 = sbr.rel (0) target = $region5
  $region4: #{tpu_custom_call.1} parent=0 // pred_region
    _
  $region5: #{tpu_custom_call.1} parent=0 // pred_fallthru
    _
  // Predicated region
  $region6: #{tpu_custom_call.1} parent=0 // pred_check
    _
  $region7: #{tpu_custom_call.1} parent=0 // pred_check_branch
    %16 = sbr.rel (0) target = $region9
  $region8: #{tpu_custom_call.1} parent=0 // pred_region
    _
  $region9: #{tpu_custom_call.1} parent=0 // pred_fallthru
    _
  // Predicated region
  $region10: #{tpu_custom_call.1} parent=0 // pred_check
    _
  $region11: #{tpu_custom_call.1} parent=0 // pred_check_branch
    %18 = sbr.rel (0) target = $region13
  $region12: #{tpu_custom_call.1} parent=0 // pred_region
    _
  $region13: #{tpu_custom_call.1} parent=0 // pred_fallthru
    _
  // Predicated region
  $region14: #{tpu_custom_call.1} parent=0 // pred_check
    _
  $region15: #{tpu_custom_call.1} parent=0 // pred_check_branch
    %20 = sbr.rel (0) target = $region17
  $region16: #{tpu_custom_call.1} parent=0 // pred_region
    _
  $region17: #{tpu_custom_call.1} parent=0 // pred_fallthru
    _
  // Predicated region
  $region18: #{tpu_custom_call.1} parent=0 // pred_check
    _
  $region19: #{tpu_custom_call.1} parent=0 // pred_check_branch
    %22 = sbr.rel (0) target = $region21
  $region20: #{tpu_custom_call.1} parent=0 // pred_region
    _
  $region21: #{tpu_custom_call.1} parent=0 // pred_fallthru
    _
  // Predicated region
  $region22: #{tpu_custom_call.1} parent=0 // pred_check
    _
  $region23: #{tpu_custom_call.1} parent=0 // pred_check_branch
    %24 = sbr.rel (0) target = $region25
  $region24: #{tpu_custom_call.1} parent=0 // pred_region
    _
  $region25: #{tpu_custom_call.1} parent=0 // pred_fallthru
    _
  %v25 = vld [vmem:[%s1] sm:$0x1]
  %v26 = vld [vmem:[%s2] sm:$0xff]
  %v27 = vld [vmem:[%s2 + $0x8] sm:$0xff]
  %v28 = vld [vmem:[%s2 + $0x10] sm:$0xff]
  %v29 = vld [vmem:[%s2 + $0x18] sm:$0xff]
  %v30 = vld [vmem:[%s3] sm:$0x1]
  %v31 = vld [vmem:[%s4] sm:$0x1]
  %v32 = vld [vmem:[#allocation2] sm:$0x1]
  %v33 = vld [vmem:[%s0] sm:$0xff]
  %35 = vset.pattern.permute.xlu0 0
  %36 = vperm.xlu0 %35, %v33
  %v37 = vpop.permute.xlu0 %36
  %v40 = vperm.slane %v25, 0
  %v42 = vmul.f32 %v37, %v40
  %v44 = vperm.slane %v30, 0
  %v46 = vadd.f32 %v42, %v44
  %vm47 = vcmask 261120
  %v49 = vsel %vm47, 0.0, 0
  %51 = vmatpush.msra.mxu0 0.0
  %52 = vmatpush.msra.mxu0 0.0
  %53 = vmatpush.msra.mxu0 0.0
  %54 = vmatpush.msra.mxu0 0.0
  %55 = vmatpush.msra.mxu0 0.0
  %56 = vmatpush.msra.mxu0 0.0
  %57 = vmatpush.msra.mxu0 0.0
  %58 = vmatpush.msra.mxu0 0.0
  %59 = vmatpush.msra.mxu0 0.0
  %60 = vmatpush.msra.mxu0 0.0
  %61 = vmatpush.msra.mxu0 0.0
  %62 = vmatpush.msra.mxu0 0.0
  %63 = vmatpush.msra.mxu0 %v29
  %64 = vmatpush.msra.mxu0 %v28
  %65 = vmatpush.msra.mxu0 %v27
  %66 = vmatpush.msra.mxu0 %v26
  %67 = vmatmul.f32.gmra.mxu0 %v49
  %v68 = vpop.f32.mrf.mxu0
  %v69 = vadd.f32 0.0, %v68
  %70 = vdwg.mxu0
  %v71 = vadd.f32 %v46, %v69
  %v72 = vtanh.pop %v71
  %v74 = vperm.slane %v31, 0
  %v76 = vmul.f32 %v72, %v74
  %v77 = vsel %vm47, %v76, 0.0
  %78 = vadd.xlane.f32.xlu0 %v77
  %v79 = vpop.xlane.xlu0 %78
  %v81 = vperm.slane %v32, 0
  %v83 = vadd.f32 %v79, %v81
  %vm84 = vcmask 7168
  %85 = vst.msk [vmem:[%s6] sm:$0xff] %vm84, %v83
  %v86 = vld [vmem:[%s0 + $0x8] sm:$0xff]
  %88 = vset.pattern.permute.xlu0 0
  %89 = vperm.xlu0 %88, %v86
  %v90 = vpop.permute.xlu0 %89
  %v92 = vmul.f32 %v90, %v40
  %v93 = vadd.f32 %v92, %v44
  %v95 = vsel %vm47, %v72, 0
  %97 = vmatpush.msra.mxu0 0.0
  %98 = vmatpush.msra.mxu0 0.0
  %99 = vmatpush.msra.mxu0 0.0
  %100 = vmatpush.msra.mxu0 0.0
  %101 = vmatpush.msra.mxu0 0.0
  %102 = vmatpush.msra.mxu0 0.0
  %103 = vmatpush.msra.mxu0 0.0
  %104 = vmatpush.msra.mxu0 0.0
  %105 = vmatpush.msra.mxu0 0.0
  %106 = vmatpush.msra.mxu0 0.0
  %107 = vmatpush.msra.mxu0 0.0
  %108 = vmatpush.msra.mxu0 0.0
  %109 = vmatpush.msra.mxu0 %v29
  %110 = vmatpush.msra.mxu0 %v28
  %111 = vmatpush.msra.mxu0 %v27
  %112 = vmatpush.msra.mxu0 %v26
  %113 = vmatmul.f32.gmra.mxu0 %v95
  %v114 = vpop.f32.mrf.mxu0
  %v115 = vadd.f32 0.0, %v114
  %116 = vdwg.mxu0
  %v117 = vadd.f32 %v93, %v115
  %v118 = vtanh.pop %v117
  %v119 = vmul.f32 %v118, %v74
  %v120 = vsel %vm47, %v119, 0.0
  %121 = vadd.xlane.f32.xlu0 %v120
  %v122 = vpop.xlane.xlu0 %121
  %v123 = vadd.f32 %v122, %v81
  %124 = vst.msk [vmem:[%s6 + $0x8] sm:$0xff] %vm84, %v123
  %v125 = vld [vmem:[%s0 + $0x10] sm:$0xff]
  %127 = vset.pattern.permute.xlu0 0
  %128 = vperm.xlu0 %127, %v125
  %v129 = vpop.permute.xlu0 %128
  %v131 = vmul.f32 %v129, %v40
  %v132 = vadd.f32 %v131, %v44
  %v134 = vsel %vm47, %v118, 0
  %136 = vmatpush.msra.mxu0 0.0
  %137 = vmatpush.msra.mxu0 0.0
  %138 = vmatpush.msra.mxu0 0.0
  %139 = vmatpush.msra.mxu0 0.0
  %140 = vmatpush.msra.mxu0 0.0
  %141 = vmatpush.msra.mxu0 0.0
  %142 = vmatpush.msra.mxu0 0.0
  %143 = vmatpush.msra.mxu0 0.0
  %144 = vmatpush.msra.mxu0 0.0
  %145 = vmatpush.msra.mxu0 0.0
  %146 = vmatpush.msra.mxu0 0.0
  %147 = vmatpush.msra.mxu0 0.0
  %148 = vmatpush.msra.mxu0 %v29
  %149 = vmatpush.msra.mxu0 %v28
  %150 = vmatpush.msra.mxu0 %v27
  %151 = vmatpush.msra.mxu0 %v26
  %152 = vmatmul.f32.gmra.mxu0 %v134
  %v153 = vpop.f32.mrf.mxu0
  %v154 = vadd.f32 0.0, %v153
  %155 = vdwg.mxu0
  %v156 = vadd.f32 %v132, %v154
  %v157 = vtanh.pop %v156
  %v158 = vmul.f32 %v157, %v74
  %v159 = vsel %vm47, %v158, 0.0
  %160 = vadd.xlane.f32.xlu0 %v159
  %v161 = vpop.xlane.xlu0 %160
  %v162 = vadd.f32 %v161, %v81
  %163 = vst.msk [vmem:[%s6 + $0x10] sm:$0xff] %vm84, %v162
  %v164 = vld [vmem:[%s0 + $0x18] sm:$0xff]
  %166 = vset.pattern.permute.xlu0 0
  %167 = vperm.xlu0 %166, %v164
  %v168 = vpop.permute.xlu0 %167
  %v170 = vmul.f32 %v168, %v40
  %v171 = vadd.f32 %v170, %v44
  %v173 = vsel %vm47, %v157, 0
  %175 = vmatpush.msra.mxu0 0.0
  %176 = vmatpush.msra.mxu0 0.0
  %177 = vmatpush.msra.mxu0 0.0
  %178 = vmatpush.msra.mxu0 0.0
  %179 = vmatpush.msra.mxu0 0.0
  %180 = vmatpush.msra.mxu0 0.0
  %181 = vmatpush.msra.mxu0 0.0
  %182 = vmatpush.msra.mxu0 0.0
  %183 = vmatpush.msra.mxu0 0.0
  %184 = vmatpush.msra.mxu0 0.0
  %185 = vmatpush.msra.mxu0 0.0
  %186 = vmatpush.msra.mxu0 0.0
  %187 = vmatpush.msra.mxu0 %v29
  %188 = vmatpush.msra.mxu0 %v28
  %189 = vmatpush.msra.mxu0 %v27
  %190 = vmatpush.msra.mxu0 %v26
  %191 = vmatmul.f32.gmra.mxu0 %v173
  %v192 = vpop.f32.mrf.mxu0
  %v193 = vadd.f32 0.0, %v192
  %194 = vdwg.mxu0
  %v195 = vadd.f32 %v171, %v193
  %v196 = vtanh.pop %v195
  %v197 = vmul.f32 %v196, %v74
  %v198 = vsel %vm47, %v197, 0.0
  %199 = vadd.xlane.f32.xlu0 %v198
  %v200 = vpop.xlane.xlu0 %199
  %v201 = vadd.f32 %v200, %v81
  %202 = vst.msk [vmem:[%s6 + $0x18] sm:$0xff] %vm84, %v201
  %v203 = vld [vmem:[%s0 + $0x20] sm:$0xff]
  %205 = vset.pattern.permute.xlu0 0
  %206 = vperm.xlu0 %205, %v203
  %v207 = vpop.permute.xlu0 %206
  %v209 = vmul.f32 %v207, %v40
  %v210 = vadd.f32 %v209, %v44
  %v212 = vsel %vm47, %v196, 0
  %214 = vmatpush.msra.mxu0 0.0
  %215 = vmatpush.msra.mxu0 0.0
  %216 = vmatpush.msra.mxu0 0.0
  %217 = vmatpush.msra.mxu0 0.0
  %218 = vmatpush.msra.mxu0 0.0
  %219 = vmatpush.msra.mxu0 0.0
  %220 = vmatpush.msra.mxu0 0.0
  %221 = vmatpush.msra.mxu0 0.0
  %222 = vmatpush.msra.mxu0 0.0
  %223 = vmatpush.msra.mxu0 0.0
  %224 = vmatpush.msra.mxu0 0.0
  %225 = vmatpush.msra.mxu0 0.0
  %226 = vmatpush.msra.mxu0 %v29
  %227 = vmatpush.msra.mxu0 %v28
  %228 = vmatpush.msra.mxu0 %v27
  %229 = vmatpush.msra.mxu0 %v26
  %230 = vmatmul.f32.gmra.mxu0 %v212
  %v231 = vpop.f32.mrf.mxu0
  %v232 = vadd.f32 0.0, %v231
  %233 = vdwg.mxu0
  %v234 = vadd.f32 %v210, %v232
  %v235 = vtanh.pop %v234
  %v236 = vmul.f32 %v235, %v74
  %v237 = vsel %vm47, %v236, 0.0
  %238 = vadd.xlane.f32.xlu0 %v237
  %v239 = vpop.xlane.xlu0 %238
  %v240 = vadd.f32 %v239, %v81
  %241 = vst.msk [vmem:[%s6 + $0x20] sm:$0xff] %vm84, %v240
  %v242 = vld [vmem:[%s0 + $0x28] sm:$0xff]
  %244 = vset.pattern.permute.xlu0 0
  %245 = vperm.xlu0 %244, %v242
  %v246 = vpop.permute.xlu0 %245
  %v248 = vmul.f32 %v246, %v40
  %v249 = vadd.f32 %v248, %v44
  %v251 = vsel %vm47, %v235, 0
  %253 = vmatpush.msra.mxu0 0.0
  %254 = vmatpush.msra.mxu0 0.0
  %255 = vmatpush.msra.mxu0 0.0
  %256 = vmatpush.msra.mxu0 0.0
  %257 = vmatpush.msra.mxu0 0.0
  %258 = vmatpush.msra.mxu0 0.0
  %259 = vmatpush.msra.mxu0 0.0
  %260 = vmatpush.msra.mxu0 0.0
  %261 = vmatpush.msra.mxu0 0.0
  %262 = vmatpush.msra.mxu0 0.0
  %263 = vmatpush.msra.mxu0 0.0
  %264 = vmatpush.msra.mxu0 0.0
  %265 = vmatpush.msra.mxu0 %v29
  %266 = vmatpush.msra.mxu0 %v28
  %267 = vmatpush.msra.mxu0 %v27
  %268 = vmatpush.msra.mxu0 %v26
  %269 = vmatmul.f32.gmra.mxu0 %v251
  %v270 = vpop.f32.mrf.mxu0
  %v271 = vadd.f32 0.0, %v270
  %272 = vdwg.mxu0
  %v273 = vadd.f32 %v249, %v271
  %v274 = vtanh.pop %v273
  %v275 = vmul.f32 %v274, %v74
  %v276 = vsel %vm47, %v275, 0.0
  %277 = vadd.xlane.f32.xlu0 %v276
  %v278 = vpop.xlane.xlu0 %277
  %v279 = vadd.f32 %v278, %v81
  %280 = vst.msk [vmem:[%s6 + $0x28] sm:$0xff] %vm84, %v279
  %v281 = vld [vmem:[%s0 + $0x30] sm:$0xff]
  %283 = vset.pattern.permute.xlu0 0
  %284 = vperm.xlu0 %283, %v281
  %v285 = vpop.permute.xlu0 %284
  %v287 = vmul.f32 %v285, %v40
  %v288 = vadd.f32 %v287, %v44
  %v290 = vsel %vm47, %v274, 0
  %292 = vmatpush.msra.mxu0 0.0
  %293 = vmatpush.msra.mxu0 0.0
  %294 = vmatpush.msra.mxu0 0.0
  %295 = vmatpush.msra.mxu0 0.0
  %296 = vmatpush.msra.mxu0 0.0
  %297 = vmatpush.msra.mxu0 0.0
  %298 = vmatpush.msra.mxu0 0.0
  %299 = vmatpush.msra.mxu0 0.0
  %300 = vmatpush.msra.mxu0 0.0
  %301 = vmatpush.msra.mxu0 0.0
  %302 = vmatpush.msra.mxu0 0.0
  %303 = vmatpush.msra.mxu0 0.0
  %304 = vmatpush.msra.mxu0 %v29
  %305 = vmatpush.msra.mxu0 %v28
  %306 = vmatpush.msra.mxu0 %v27
  %307 = vmatpush.msra.mxu0 %v26
  %308 = vmatmul.f32.gmra.mxu0 %v290
  %v309 = vpop.f32.mrf.mxu0
  %v310 = vadd.f32 0.0, %v309
  %311 = vdwg.mxu0
  %v312 = vadd.f32 %v288, %v310
  %v313 = vtanh.pop %v312
  %v314 = vmul.f32 %v313, %v74
  %v315 = vsel %vm47, %v314, 0.0
  %316 = vadd.xlane.f32.xlu0 %v315
  %v317 = vpop.xlane.xlu0 %316
  %v318 = vadd.f32 %v317, %v81
  %319 = vst.msk [vmem:[%s6 + $0x30] sm:$0xff] %vm84, %v318
  %v320 = vld [vmem:[%s0 + $0x38] sm:$0xff]
  %322 = vset.pattern.permute.xlu0 0
  %323 = vperm.xlu0 %322, %v320
  %v324 = vpop.permute.xlu0 %323
  %v326 = vmul.f32 %v324, %v40
  %v327 = vadd.f32 %v326, %v44
  %v329 = vsel %vm47, %v313, 0
  %331 = vmatpush.msra.mxu0 0.0
  %332 = vmatpush.msra.mxu0 0.0
  %333 = vmatpush.msra.mxu0 0.0
  %334 = vmatpush.msra.mxu0 0.0
  %335 = vmatpush.msra.mxu0 0.0
  %336 = vmatpush.msra.mxu0 0.0
  %337 = vmatpush.msra.mxu0 0.0
  %338 = vmatpush.msra.mxu0 0.0
  %339 = vmatpush.msra.mxu0 0.0
  %340 = vmatpush.msra.mxu0 0.0
  %341 = vmatpush.msra.mxu0 0.0
  %342 = vmatpush.msra.mxu0 0.0
  %343 = vmatpush.msra.mxu0 %v29
  %344 = vmatpush.msra.mxu0 %v28
  %345 = vmatpush.msra.mxu0 %v27
  %346 = vmatpush.msra.mxu0 %v26
  %347 = vmatmul.f32.gmra.mxu0 %v329
  %v348 = vpop.f32.mrf.mxu0
  %v349 = vadd.f32 0.0, %v348
  %350 = vdwg.mxu0
  %v351 = vadd.f32 %v327, %v349
  %v352 = vtanh.pop %v351
  %v353 = vmul.f32 %v352, %v74
  %v354 = vsel %vm47, %v353, 0.0
  %355 = vadd.xlane.f32.xlu0 %v354
  %v356 = vpop.xlane.xlu0 %355
  %v357 = vadd.f32 %v356, %v81
  %358 = vst.msk [vmem:[%s6 + $0x38] sm:$0xff] %vm84, %v357
  // Predicated region
  $region26: #{tpu_custom_call.1} parent=0 // pred_check
    _
  $region27: #{tpu_custom_call.1} parent=0 // pred_check_branch
    %360 = sbr.rel (0) target = $region29
  $region28: #{tpu_custom_call.1} parent=0 // pred_region
    _
  $region29: #{tpu_custom_call.1} parent=0 // pred_fallthru
    _
  // Predicated region
  $region30: #{tpu_custom_call.1} parent=0 // pred_check
    _
  $region31: #{tpu_custom_call.1} parent=0 // pred_check_branch
    %362 = sbr.rel (0) target = $region33
  $region32: #{tpu_custom_call.1} parent=0 // pred_region
    _
  $region33: #{tpu_custom_call.1} parent=0 // pred_fallthru
    _

</llo_original>
